<compile_context>
chip_gen: v5e
topology: v5e:2x2
jax: 0.10.0
libtpu: 0.0.40
codegen_flags: <defaults>
</compile_context>

<pallas_src>
import functools

import jax
import jax.numpy as jnp
import numpy as np
from jax.experimental import pallas as pl
from jax.experimental.pallas import tpu as pltpu

# Boxes packed per row -> output last dim = PACK*O lanes (unmasked full-lane
# stores).  PACK=8 matches the 256-wide MXU of v6e/v7x; PACK=4 is the v5e
# native width (no downside to 8 there — the kernel is HBM-bound).
PACK = 8

_SUBLANE = 8
_TILE_BOXES = 32768  # ~32K boxes per grid step (== 8192 packed rows @ PACK=4)


def _round_up(x, m):
    return ((x + m - 1) // m) * m


def _cdiv(a, b):
    return -(-a // b)


def _box_embed_kernel(x_ref, w1_ref, t1_ref, w2_ref, t2_ref, o_ref,
                      *, compute_dtype):
    """One row-tile of the folded BoxEmbedding forward pass.

    x_ref  : (tm, PACK*4)       packed xyxy boxes (xyxy->xywh folded into W1)
    w1_ref : (PACK*4, PACK*H)   block-diag conv1 weight, BN1 scale folded in
    t1_ref : (1, PACK*H)        BN1 shift + conv1 bias, tiled PACK times
    w2_ref : (PACK*H, PACK*O)   block-diag conv2 weight, BN2 scale folded in
    t2_ref : (1, PACK*O)        BN2 shift + conv2 bias, tiled PACK times
    o_ref  : (tm, PACK*O)       packed output embeddings
    """
    x = x_ref[...]
    w1 = w1_ref[...]
    w2 = w2_ref[...]
    if compute_dtype is not None:
        x = x.astype(compute_dtype)
        w1 = w1.astype(compute_dtype)
        w2 = w2.astype(compute_dtype)
    h = jnp.dot(x, w1, preferred_element_type=jnp.float32)
    h = jnp.maximum(h + t1_ref[...], 0.0)
    if compute_dtype is not None:
        h = h.astype(compute_dtype)
    y = jnp.dot(h, w2, preferred_element_type=jnp.float32)
    o_ref[...] = jnp.maximum(y + t2_ref[...], 0.0).astype(o_ref.dtype)


def fold_params(w1, b1, g1, be1, m1, v1,
                w2, b2, g2, be2, m2, v2,
                *, eps=1e-5, mode="xyxy", pack=PACK):
    """Fold box transform + eval-mode BN + conv bias into block-diag weights.

    w1: (4, H)  conv1 weight as a matmul matrix (torch (H,4,1,1) transposed)
    w2: (H, O)  conv2 weight as a matmul matrix
    Returns (w1_bd, t1_bd, w2_bd, t2_bd) ready for the Pallas kernel.
    """
    w1 = jnp.asarray(w1, jnp.float32)
    w2 = jnp.asarray(w2, jnp.float32)

    if mode == "xyxy":
        # xt = x @ A with x=[x1,y1,x2,y2] -> [x1, y1, x2-x1, y2-y1]
        A = jnp.array([[1.0, 0.0, -1.0, 0.0],
                       [0.0, 1.0, 0.0, -1.0],
                       [0.0, 0.0, 1.0, 0.0],
                       [0.0, 0.0, 0.0, 1.0]], jnp.float32)
        w1 = A @ w1

    s1 = g1 / jnp.sqrt(v1 + eps)
    t1 = be1 - m1 * s1 + b1 * s1
    s2 = g2 / jnp.sqrt(v2 + eps)
    t2 = be2 - m2 * s2 + b2 * s2

    w1 = w1 * s1[None, :]   # fold BN1 scale into columns of W1
    w2 = w2 * s2[None, :]   # fold BN2 scale into columns of W2

    eye = jnp.eye(pack, dtype=jnp.float32)
    w1_bd = jnp.kron(eye, w1)                 # (pack*4, pack*H)
    w2_bd = jnp.kron(eye, w2)                 # (pack*H, pack*O)
    t1_bd = jnp.tile(t1, pack)[None, :]       # (1, pack*H)
    t2_bd = jnp.tile(t2, pack)[None, :]       # (1, pack*O)
    return w1_bd, t1_bd, w2_bd, t2_bd


@functools.partial(
    jax.jit, static_argnames=("tile_boxes", "out_dtype", "compute_dtype"))
def box_embedding_forward(bbox, w1_bd, t1_bd, w2_bd, t2_bd, *,
                          tile_boxes=_TILE_BOXES,
                          out_dtype=jnp.float32,
                          compute_dtype=None):
    """bbox: (B, T, N, 4) float32 -> (B, T, N, O) in `out_dtype`.

    out_dtype=jnp.bfloat16     halves the dominant (output-writeback) stream.
    compute_dtype=jnp.bfloat16 casts matmul operands (f32 accumulation kept).
    """
    B, T, N, P = bbox.shape
    pin = w1_bd.shape[0]            # PACK * 4
    pack = pin // P
    wout = t2_bd.shape[1]           # PACK * O
    O = wout // pack
    M = B * T * N

    # --- balanced row tiling (static Python math) ---------------------------
    Mp = _cdiv(M, pack)                                # packed rows
    target_rows = max(_SUBLANE, tile_boxes // pack)    # ~32K boxes per step
    g = max(1, _cdiv(Mp, target_rows))                 # grid steps
    # v7x: 2 TensorCores are sharded over the "parallel" axis — make sure the
    # grid has >= 2 steps once the problem is big enough to split.
    if g == 1 and Mp >= 64 * _SUBLANE:
        g = 2
    tm = _round_up(_cdiv(Mp, g), _SUBLANE)             # balanced tile
    Mp_pad = g * tm
    rows_needed = Mp_pad * pack                        # boxes incl. padding

    # --- single host-side pad (skipped entirely in the aligned case) --------
    x = bbox.reshape(M, P).astype(jnp.float32)
    if rows_needed != M:
        x = jnp.pad(x, ((0, rows_needed - M), (0, 0)))
    xp = x.reshape(Mp_pad, pin)

    kernel = functools.partial(_box_embed_kernel, compute_dtype=compute_dtype)
    out = pl.pallas_call(
        kernel,
        out_shape=jax.ShapeDtypeStruct((Mp_pad, wout), out_dtype),
        grid_spec=pltpu.PrefetchScalarGridSpec(
            num_scalar_prefetch=0,
            grid=(g,),
            in_specs=[
                pl.BlockSpec((tm, pin), lambda i: (i, 0)),   # packed boxes
                # Parameter slabs: constant index_map -> grid-resident, no
                # per-step DMA.  (pl.Buffered(1) deliberately not used.)
                pl.BlockSpec(w1_bd.shape, lambda i: (0, 0)),
                pl.BlockSpec(t1_bd.shape, lambda i: (0, 0)),
                pl.BlockSpec(w2_bd.shape, lambda i: (0, 0)),
                pl.BlockSpec(t2_bd.shape, lambda i: (0, 0)),
            ],
            out_specs=pl.BlockSpec((tm, wout), lambda i: (i, 0)),
        ),
        compiler_params=pltpu.CompilerParams(
            dimension_semantics=("parallel",)),
    )(xp, w1_bd, t1_bd, w2_bd, t2_bd)

    # --- unpack: pure reshape when aligned, single fused slice otherwise ----
    flat = out.reshape(Mp_pad * pack, O)
    if Mp_pad * pack != M:
        flat = flat[:M]
    return flat.reshape(B, T, N, O)


def make_raw_params(key, pose_dim=4, hidden_dim=32, output_dim=32):
    """Deterministic synthetic Conv2d + BatchNorm2d (eval-mode) parameters."""
    ks = jax.random.split(key, 10)
    w1 = 0.1 * jax.random.normal(ks[0], (pose_dim, hidden_dim), jnp.float32)
    b1 = 0.1 * jax.random.normal(ks[1], (hidden_dim,), jnp.float32)
    g1 = 1.0 + 0.05 * jax.random.normal(ks[2], (hidden_dim,), jnp.float32)
    be1 = 0.05 * jax.random.normal(ks[3], (hidden_dim,), jnp.float32)
    m1 = 0.02 * jax.random.normal(ks[4], (hidden_dim,), jnp.float32)
    v1 = 1.0 + 0.1 * jax.random.uniform(ks[5], (hidden_dim,), jnp.float32)
    w2 = 0.1 * jax.random.normal(ks[6], (hidden_dim, output_dim), jnp.float32)
    b2 = 0.1 * jax.random.normal(ks[7], (output_dim,), jnp.float32)
    g2 = 1.0 + 0.05 * jax.random.normal(ks[8], (output_dim,), jnp.float32)
    be2 = 0.05 * jax.random.normal(ks[9], (output_dim,), jnp.float32)
    m2 = jnp.zeros((output_dim,), jnp.float32)
    v2 = jnp.ones((output_dim,), jnp.float32)
    return (w1, b1, g1, be1, m1, v1, w2, b2, g2, be2, m2, v2)


def reference_forward(bbox, w1, b1, g1, be1, m1, v1,
                      w2, b2, g2, be2, m2, v2, eps=1e-5):
    """Pure-JAX reference matching the PyTorch forward (eval-mode BN)."""
    xy = bbox[..., 0:2]
    wh = bbox[..., 2:4] - xy
    xt = jnp.concatenate([xy, wh], axis=-1)
    h = xt @ w1 + b1
    h = (h - m1) / jnp.sqrt(v1 + eps) * g1 + be1
    h = jnp.maximum(h, 0.0)
    y = h @ w2 + b2
    y = (y - m2) / jnp.sqrt(v2 + eps) * g2 + be2
    return jnp.maximum(y, 0.0)


def _make_boxes(key, B, T, N):
    xy1 = jax.random.uniform(key, (B, T, N, 2), jnp.float32, 0.0, 0.5)
    wh = jax.random.uniform(jax.random.fold_in(key, 1), (B, T, N, 2),
                            jnp.float32, 0.05, 0.5)
    return jnp.concatenate([xy1, xy1 + wh], axis=-1)  # valid xyxy boxes


if __name__ == "__main__":
    key = jax.random.PRNGKey(0)
    kx, kp = jax.random.split(key)

    # bbox: (batchsize=2, num_frames=8, num_objects=4, 4) in xyxy.
    B, T, N = 2, 8, 4
    bbox = _make_boxes(kx, B, T, N)

    raw = make_raw_params(kp, pose_dim=4, hidden_dim=32, output_dim=32)
    folded = fold_params(*raw, eps=1e-5, mode="xyxy", pack=PACK)
    ref = reference_forward(bbox, *raw)

    # 1) f32 path — matches the PyTorch module's eval-mode forward exactly.
    out = jax.block_until_ready(box_embedding_forward(bbox, *folded))
    assert out.shape == (B, T, N, 32), out.shape
    np.testing.assert_allclose(np.asarray(out), np.asarray(ref),
                               rtol=1e-4, atol=1e-5)

    # 2) Ragged shape — exercises the single-pad + single-slice tail path.
    bbox2 = _make_boxes(jax.random.fold_in(kx, 7), 3, 7, 5)
    out2 = jax.block_until_ready(box_embedding_forward(bbox2, *folded))
    ref2 = reference_forward(bbox2, *raw)
    np.testing.assert_allclose(np.asarray(out2), np.asarray(ref2),
                               rtol=1e-4, atol=1e-5)

    # 3) Bandwidth-optimized path: bf16 output + bf16 matmul operands
    #    (reviewer's biggest levers); compare loosely against the f32 ref.
    out_fast = box_embedding_forward(bbox, *folded,
                                     out_dtype=jnp.bfloat16,
                                     compute_dtype=jnp.bfloat16)
    out_fast = jax.block_until_ready(out_fast)
    np.testing.assert_allclose(np.asarray(out_fast.astype(jnp.float32)),
                               np.asarray(ref), rtol=3e-2, atol=3e-2)

    print("KERNEL_OK")
</pallas_src>

<mosaic_0001>
module attributes {stable_mosaic.version = 11 : i64} {
  func.func @_box_embed_kernel(%arg0: i32, %arg1: memref<8x32xf32, #tpu.memory_space<vmem>>, %arg2: memref<32x256xf32, #tpu.memory_space<vmem>>, %arg3: memref<1x256xf32, #tpu.memory_space<vmem>>, %arg4: memref<256x256xf32, #tpu.memory_space<vmem>>, %arg5: memref<1x256xf32, #tpu.memory_space<vmem>>, %arg6: memref<8x256xf32, #tpu.memory_space<vmem>>) attributes {dimension_semantics = [#tpu.dimension_semantics<parallel>], iteration_bounds = array<i64: 1>, scalar_prefetch = 0 : i64, scratch_operands = 0 : i64, tpu.core_type = #tpu.core_type<tc>, window_params = [{transform_indices = @transform_0, window_bounds = array<i64: 8, 32>}, {pipeline_mode = #tpu.pipeline_mode<synchronous>, transform_indices = @transform_1, window_bounds = array<i64: 32, 256>}, {pipeline_mode = #tpu.pipeline_mode<synchronous>, transform_indices = @transform_2, window_bounds = array<i64: 1, 256>}, {pipeline_mode = #tpu.pipeline_mode<synchronous>, transform_indices = @transform_3, window_bounds = array<i64: 256, 256>}, {pipeline_mode = #tpu.pipeline_mode<synchronous>, transform_indices = @transform_4, window_bounds = array<i64: 1, 256>}, {transform_indices = @transform_5, window_bounds = array<i64: 8, 256>}]} {
    %c0 = arith.constant 0 : index
    %c0_0 = arith.constant 0 : index
    %0 = vector.load %arg1[%c0, %c0_0] : memref<8x32xf32, #tpu.memory_space<vmem>>, vector<8x32xf32>
    %c0_1 = arith.constant 0 : index
    %c0_2 = arith.constant 0 : index
    %1 = vector.load %arg2[%c0_1, %c0_2] : memref<32x256xf32, #tpu.memory_space<vmem>>, vector<32x256xf32>
    %c0_3 = arith.constant 0 : index
    %c0_4 = arith.constant 0 : index
    %2 = vector.load %arg4[%c0_3, %c0_4] : memref<256x256xf32, #tpu.memory_space<vmem>>, vector<256x256xf32>
    %cst = arith.constant dense<0.000000e+00> : vector<8x256xf32>
    %3 = tpu.matmul %0, %1, %cst {dimension_numbers = #tpu.dot_dimension_numbers<[1], [0], [0], [1], [0, 0, 1, 1], [], []>} : vector<8x32xf32>, vector<32x256xf32>, vector<8x256xf32> -> vector<8x256xf32>
    %c0_5 = arith.constant 0 : index
    %c0_6 = arith.constant 0 : index
    %4 = vector.load %arg3[%c0_5, %c0_6] : memref<1x256xf32, #tpu.memory_space<vmem>>, vector<1x256xf32>
    %5 = vector.broadcast %4 : vector<1x256xf32> to vector<8x256xf32>
    %6 = arith.addf %3, %5 : vector<8x256xf32>
    %cst_7 = arith.constant 0.000000e+00 : f32
    %7 = vector.broadcast %cst_7 : f32 to vector<8x256xf32>
    %8 = arith.maximumf %6, %7 : vector<8x256xf32>
    %cst_8 = arith.constant dense<0.000000e+00> : vector<8x256xf32>
    %9 = tpu.matmul %8, %2, %cst_8 {dimension_numbers = #tpu.dot_dimension_numbers<[1], [0], [0], [1], [0, 0, 1, 1], [], []>} : vector<8x256xf32>, vector<256x256xf32>, vector<8x256xf32> -> vector<8x256xf32>
    %c0_9 = arith.constant 0 : index
    %c0_10 = arith.constant 0 : index
    %10 = vector.load %arg5[%c0_9, %c0_10] : memref<1x256xf32, #tpu.memory_space<vmem>>, vector<1x256xf32>
    %11 = vector.broadcast %10 : vector<1x256xf32> to vector<8x256xf32>
    %12 = arith.addf %9, %11 : vector<8x256xf32>
    %cst_11 = arith.constant 0.000000e+00 : f32
    %13 = vector.broadcast %cst_11 : f32 to vector<8x256xf32>
    %14 = arith.maximumf %12, %13 : vector<8x256xf32>
    %c0_12 = arith.constant 0 : index
    %c0_13 = arith.constant 0 : index
    %15 = vector.load %arg6[%c0_12, %c0_13] : memref<8x256xf32, #tpu.memory_space<vmem>>, vector<8x256xf32>
    tpu.vector_store %arg6[%c0_12, %c0_13], %14 {strides = array<i32>} : memref<8x256xf32, #tpu.memory_space<vmem>>, vector<8x256xf32>,
    return
  }
  func.func @transform_0(%arg0: i32) -> (i32, i32) {
    %c0_i32 = arith.constant 0 : i32
    %c0_i32_0 = arith.constant 0 : i32
    return %arg0, %c0_i32 : i32, i32
  }
  func.func @transform_1(%arg0: i32) -> (i32, i32) {
    %c0_i32 = arith.constant 0 : i32
    %c0_i32_0 = arith.constant 0 : i32
    %c0_i32_1 = arith.constant 0 : i32
    return %c0_i32, %c0_i32_0 : i32, i32
  }
  func.func @transform_2(%arg0: i32) -> (i32, i32) {
    %c0_i32 = arith.constant 0 : i32
    %c0_i32_0 = arith.constant 0 : i32
    %c0_i32_1 = arith.constant 0 : i32
    return %c0_i32, %c0_i32_0 : i32, i32
  }
  func.func @transform_3(%arg0: i32) -> (i32, i32) {
    %c0_i32 = arith.constant 0 : i32
    %c0_i32_0 = arith.constant 0 : i32
    %c0_i32_1 = arith.constant 0 : i32
    return %c0_i32, %c0_i32_0 : i32, i32
  }
  func.func @transform_4(%arg0: i32) -> (i32, i32) {
    %c0_i32 = arith.constant 0 : i32
    %c0_i32_0 = arith.constant 0 : i32
    %c0_i32_1 = arith.constant 0 : i32
    return %c0_i32, %c0_i32_0 : i32, i32
  }
  func.func @transform_5(%arg0: i32) -> (i32, i32) {
    %c0_i32 = arith.constant 0 : i32
    %c0_i32_0 = arith.constant 0 : i32
    return %arg0, %c0_i32 : i32, i32
  }
}

</mosaic_0001>

<llo_original>
// kernel: box_embedding_forward.1
$region0: #{box_embedding_forward.1}
  #allocation0 [shape = 'u32[]', space=smem, size = 0x4, offset = 0x4, fixed_abs, tag = 'smem constant byte address 0x4 - core index']
  #allocation1 [shape = 'u32[72,128]{1,0:T(1,128)}', space=vmem, size = 0x9000, scoped, tag = 'internal scratch']
  %s0 = inlined_call_operand.vmem [shape: f32[8,32], index: 0, kind: input, shape index: {}]
  %s1 = inlined_call_operand.vmem [shape: f32[32,256], index: 1, kind: input, shape index: {}]
  %s2 = inlined_call_operand.vmem [shape: f32[1,256], index: 2, kind: input, shape index: {}]
  %s3 = inlined_call_operand.hbm [shape: f32[256,256], index: 3, kind: input, shape index: {}]
  %s4 = inlined_call_operand.vmem [shape: f32[1,256], index: 4, kind: input, shape index: {}]
  %s5 = inlined_call_operand.vmem [shape: f32[8,256], index: 5, kind: output, shape index: {}]
  %s6 = sld [smem:[#allocation0]]
  $region34: #{box_embedding_forward.1} parent=0
    _
  %s8 = ssub.s32 1, %s6
  %s9 = scalar_select 0, %s8, %s6
  $region1: #{box_embedding_forward.1} parent=0
    #allocation2 [shape = 'u8[262144]{0}', space=vmem, size = 0x40000, scoped, tag = 'input window, operand 3, single buffered']
    #allocation3 [shape = 's32[1]{0}', space=sflag, size = 0x4, scoped, tag = 'scoped memory for box_embedding_forward.1']
    %10 = vsyncpa [#allocation3], 0
    // Predicated region
    $region2: #{box_embedding_forward.1} parent=1 // pred_check
      _
    $region3: #{box_embedding_forward.1} parent=1 // pred_check_branch
      %12 = sbr.rel (0) target = $region5
    $region4: #{box_embedding_forward.1} parent=1 // pred_region
      _
    $region5: #{box_embedding_forward.1} parent=1 // pred_fallthru
      _
    // Predicated region
    $region6: #{box_embedding_forward.1} parent=1 // pred_check
      _
    $region7: #{box_embedding_forward.1} parent=1 // pred_check_branch
      %14 = sbr.rel (0) target = $region9
    $region8: #{box_embedding_forward.1} parent=1 // pred_region
      _
    $region9: #{box_embedding_forward.1} parent=1 // pred_fallthru
      _
    // Predicated region
    $region10: #{box_embedding_forward.1} parent=1 // pred_check
      _
    $region11: #{box_embedding_forward.1} parent=1 // pred_check_branch
      %16 = sbr.rel (0) target = $region13
    $region12: #{box_embedding_forward.1} parent=1 // pred_region
      _
    $region13: #{box_embedding_forward.1} parent=1 // pred_fallthru
      _
    // Predicated region
    $region14: #{box_embedding_forward.1} parent=1 // pred_check
      _
    $region15: #{box_embedding_forward.1} parent=1 // pred_check_branch
      %18 = sbr.rel (0) target = $region17
    $region16: #{box_embedding_forward.1} parent=1 // pred_region
      %20 = vsyncadd [#allocation3], 0
      %s21 = sshll.u32 %s3, 4
      %s22 = int_to_ptr.hbm [resolvable:$true] %s21
      %s23 = sshll.u32 [#allocation2], 4
      %s24 = int_to_ptr.vmem [resolvable:$true] %s23
      %29 = dma.hbm_to_vmem [thread:$0]  %s22, 8192, %s24, [#allocation3], 256, 256, 16
    $region17: #{box_embedding_forward.1} parent=1 // pred_fallthru
      _
    // Predicated region
    $region18: #{box_embedding_forward.1} parent=1 // pred_check
      _
    $region19: #{box_embedding_forward.1} parent=1 // pred_check_branch
      %31 = sbr.rel (0) target = $region21
    $region20: #{box_embedding_forward.1} parent=1 // pred_region
      _
    $region21: #{box_embedding_forward.1} parent=1 // pred_fallthru
      _
    // Predicated region
    $region22: #{box_embedding_forward.1} parent=1 // pred_check
      _
    $region23: #{box_embedding_forward.1} parent=1 // pred_check_branch
      %33 = sbr.rel (0) target = $region25
    $region24: #{box_embedding_forward.1} parent=1 // pred_region
      %35 = dma.done [#allocation3], 8192
    $region25: #{box_embedding_forward.1} parent=1 // pred_fallthru
      _
    %v36 = vld [vmem:[%s0] sm:$0xff]
    %v37 = vld [vmem:[%s1] sm:$0xff]
    %v38 = vld [vmem:[%s1 + $0x8] sm:$0xff]
    %v39 = vld [vmem:[%s1 + $0x10] sm:$0xff]
    %v40 = vld [vmem:[%s1 + $0x18] sm:$0xff]
    %v41 = vld [vmem:[%s1 + $0x20] sm:$0xff]
    %v42 = vld [vmem:[%s1 + $0x28] sm:$0xff]
    %v43 = vld [vmem:[%s1 + $0x30] sm:$0xff]
    %v44 = vld [vmem:[%s1 + $0x38] sm:$0xff]
    %v45 = vld [vmem:[#allocation2] sm:$0xff]
    %v46 = vld [vmem:[#allocation2 + $0x8] sm:$0xff]
    %v47 = vld [vmem:[#allocation2 + $0x10] sm:$0xff]
    %v48 = vld [vmem:[#allocation2 + $0x18] sm:$0xff]
    %v49 = vld [vmem:[#allocation2 + $0x20] sm:$0xff]
    %v50 = vld [vmem:[#allocation2 + $0x28] sm:$0xff]
    %v51 = vld [vmem:[#allocation2 + $0x30] sm:$0xff]
    %v52 = vld [vmem:[#allocation2 + $0x38] sm:$0xff]
    %v53 = vld [vmem:[#allocation2 + $0x40] sm:$0xff]
    %v54 = vld [vmem:[#allocation2 + $0x48] sm:$0xff]
    %v55 = vld [vmem:[#allocation2 + $0x50] sm:$0xff]
    %v56 = vld [vmem:[#allocation2 + $0x58] sm:$0xff]
    %v57 = vld [vmem:[#allocation2 + $0x60] sm:$0xff]
    %v58 = vld [vmem:[#allocation2 + $0x68] sm:$0xff]
    %v59 = vld [vmem:[#allocation2 + $0x70] sm:$0xff]
    %v60 = vld [vmem:[#allocation2 + $0x78] sm:$0xff]
    %v61 = vld [vmem:[#allocation2 + $0x80] sm:$0xff]
    %v62 = vld [vmem:[#allocation2 + $0x88] sm:$0xff]
    %v63 = vld [vmem:[#allocation2 + $0x90] sm:$0xff]
    %v64 = vld [vmem:[#allocation2 + $0x98] sm:$0xff]
    %v65 = vld [vmem:[#allocation2 + $0xa0] sm:$0xff]
    %v66 = vld [vmem:[#allocation2 + $0xa8] sm:$0xff]
    %v67 = vld [vmem:[#allocation2 + $0xb0] sm:$0xff]
    %v68 = vld [vmem:[#allocation2 + $0xb8] sm:$0xff]
    %v69 = vld [vmem:[#allocation2 + $0xc0] sm:$0xff]
    %v70 = vld [vmem:[#allocation2 + $0xc8] sm:$0xff]
    %v71 = vld [vmem:[#allocation2 + $0xd0] sm:$0xff]
    %v72 = vld [vmem:[#allocation2 + $0xd8] sm:$0xff]
    %v73 = vld [vmem:[#allocation2 + $0xe0] sm:$0xff]
    %v74 = vld [vmem:[#allocation2 + $0xe8] sm:$0xff]
    %v75 = vld [vmem:[#allocation2 + $0xf0] sm:$0xff]
    %v76 = vld [vmem:[#allocation2 + $0xf8] sm:$0xff]
    %v77 = vld [vmem:[#allocation2 + $0x100] sm:$0xff]
    %v78 = vld [vmem:[#allocation2 + $0x108] sm:$0xff]
    %v79 = vld [vmem:[#allocation2 + $0x110] sm:$0xff]
    %v80 = vld [vmem:[#allocation2 + $0x118] sm:$0xff]
    %v81 = vld [vmem:[#allocation2 + $0x120] sm:$0xff]
    %v82 = vld [vmem:[#allocation2 + $0x128] sm:$0xff]
    %v83 = vld [vmem:[#allocation2 + $0x130] sm:$0xff]
    %v84 = vld [vmem:[#allocation2 + $0x138] sm:$0xff]
    %v85 = vld [vmem:[#allocation2 + $0x140] sm:$0xff]
    %v86 = vld [vmem:[#allocation2 + $0x148] sm:$0xff]
    %v87 = vld [vmem:[#allocation2 + $0x150] sm:$0xff]
    %v88 = vld [vmem:[#allocation2 + $0x158] sm:$0xff]
    %v89 = vld [vmem:[#allocation2 + $0x160] sm:$0xff]
    %v90 = vld [vmem:[#allocation2 + $0x168] sm:$0xff]
    %v91 = vld [vmem:[#allocation2 + $0x170] sm:$0xff]
    %v92 = vld [vmem:[#allocation2 + $0x178] sm:$0xff]
    %v93 = vld [vmem:[#allocation2 + $0x180] sm:$0xff]
    %v94 = vld [vmem:[#allocation2 + $0x188] sm:$0xff]
    %v95 = vld [vmem:[#allocation2 + $0x190] sm:$0xff]
    %v96 = vld [vmem:[#allocation2 + $0x198] sm:$0xff]
    %v97 = vld [vmem:[#allocation2 + $0x1a0] sm:$0xff]
    %v98 = vld [vmem:[#allocation2 + $0x1a8] sm:$0xff]
    %v99 = vld [vmem:[#allocation2 + $0x1b0] sm:$0xff]
    %v100 = vld [vmem:[#allocation2 + $0x1b8] sm:$0xff]
    %v101 = vld [vmem:[#allocation2 + $0x1c0] sm:$0xff]
    %v102 = vld [vmem:[#allocation2 + $0x1c8] sm:$0xff]
    %v103 = vld [vmem:[#allocation2 + $0x1d0] sm:$0xff]
    %v104 = vld [vmem:[#allocation2 + $0x1d8] sm:$0xff]
    %v105 = vld [vmem:[#allocation2 + $0x1e0] sm:$0xff]
    %v106 = vld [vmem:[#allocation2 + $0x1e8] sm:$0xff]
    %v107 = vld [vmem:[#allocation2 + $0x1f0] sm:$0xff]
    %v108 = vld [vmem:[#allocation2 + $0x1f8] sm:$0xff]
    %v109 = vld [vmem:[%s2] sm:$0x3]
    %v111 = vperm.slane %v109, 0
    %v112 = vperm.slane %v109, 1
    %vm115 = vcmask 261120
    %v117 = vsel %vm115, %v36, 0
    %119 = vmatpush.msra.mxu0 0.0
    %120 = vmatpush.msra.mxu0 0.0
    %121 = vmatpush.msra.mxu0 0.0
    %122 = vmatpush.msra.mxu0 0.0
    %123 = vmatpush.msra.mxu0 0.0
    %124 = vmatpush.msra.mxu0 0.0
    %125 = vmatpush.msra.mxu0 0.0
    %126 = vmatpush.msra.mxu0 0.0
    %127 = vmatpush.msra.mxu0 0.0
    %128 = vmatpush.msra.mxu0 0.0
    %129 = vmatpush.msra.mxu0 0.0
    %130 = vmatpush.msra.mxu0 0.0
    %131 = vmatpush.msra.mxu0 %v43
    %132 = vmatpush.msra.mxu0 %v41
    %133 = vmatpush.msra.mxu0 %v39
    %134 = vmatpush.msra.mxu0 %v37
    %135 = vmatmul.f32.gmra.mxu0 %v117
    %v136 = vpop.f32.mrf.mxu0
    %v137 = vadd.f32 %v111, %v136
    %138 = vdwg.mxu0
    %139 = vmatpush.msra.mxu0 0.0
    %140 = vmatpush.msra.mxu0 0.0
    %141 = vmatpush.msra.mxu0 0.0
    %142 = vmatpush.msra.mxu0 0.0
    %143 = vmatpush.msra.mxu0 0.0
    %144 = vmatpush.msra.mxu0 0.0
    %145 = vmatpush.msra.mxu0 0.0
    %146 = vmatpush.msra.mxu0 0.0
    %147 = vmatpush.msra.mxu0 0.0
    %148 = vmatpush.msra.mxu0 0.0
    %149 = vmatpush.msra.mxu0 0.0
    %150 = vmatpush.msra.mxu0 0.0
    %151 = vmatpush.msra.mxu0 %v44
    %152 = vmatpush.msra.mxu0 %v42
    %153 = vmatpush.msra.mxu0 %v40
    %154 = vmatpush.msra.mxu0 %v38
    %155 = vmatmul.f32.gmra.mxu0 %v117
    %v156 = vpop.f32.mrf.mxu0
    %v157 = vadd.f32 %v112, %v156
    %158 = vdwg.mxu0
    %v159 = vmax.f32 %v137, 0.0
    %v160 = vmax.f32 %v157, 0.0
    %v161 = vld [vmem:[%s4] sm:$0x3]
    %v163 = vperm.slane %v161, 0
    %v164 = vperm.slane %v161, 1
    %167 = vmatpush.msra.mxu0 %v75
    %168 = vmatpush.msra.mxu0 %v73
    %169 = vmatpush.msra.mxu0 %v71
    %170 = vmatpush.msra.mxu0 %v69
    %171 = vmatpush.msra.mxu0 %v67
    %172 = vmatpush.msra.mxu0 %v65
    %173 = vmatpush.msra.mxu0 %v63
    %174 = vmatpush.msra.mxu0 %v61
    %175 = vmatpush.msra.mxu0 %v59
    %176 = vmatpush.msra.mxu0 %v57
    %177 = vmatpush.msra.mxu0 %v55
    %178 = vmatpush.msra.mxu0 %v53
    %179 = vmatpush.msra.mxu0 %v51
    %180 = vmatpush.msra.mxu0 %v49
    %181 = vmatpush.msra.mxu0 %v47
    %182 = vmatpush.msra.mxu0 %v45
    %183 = vmatmul.f32.gmra.mxu0 %v159
    %v184 = vpop.f32.mrf.mxu0
    %v185 = vadd.f32 %v163, %v184
    %186 = vdwg.mxu0
    %187 = vmatpush.msra.mxu0 %v107
    %188 = vmatpush.msra.mxu0 %v105
    %189 = vmatpush.msra.mxu0 %v103
    %190 = vmatpush.msra.mxu0 %v101
    %191 = vmatpush.msra.mxu0 %v99
    %192 = vmatpush.msra.mxu0 %v97
    %193 = vmatpush.msra.mxu0 %v95
    %194 = vmatpush.msra.mxu0 %v93
    %195 = vmatpush.msra.mxu0 %v91
    %196 = vmatpush.msra.mxu0 %v89
    %197 = vmatpush.msra.mxu0 %v87
    %198 = vmatpush.msra.mxu0 %v85
    %199 = vmatpush.msra.mxu0 %v83
    %200 = vmatpush.msra.mxu0 %v81
    %201 = vmatpush.msra.mxu0 %v79
    %202 = vmatpush.msra.mxu0 %v77
    %203 = vmatmul.f32.gmra.mxu0 %v160
    %v204 = vpop.f32.mrf.mxu0
    %v205 = vadd.f32 %v185, %v204
    %206 = vdwg.mxu0
    %207 = vmatpush.msra.mxu0 %v76
    %208 = vmatpush.msra.mxu0 %v74
    %209 = vmatpush.msra.mxu0 %v72
    %210 = vmatpush.msra.mxu0 %v70
    %211 = vmatpush.msra.mxu0 %v68
    %212 = vmatpush.msra.mxu0 %v66
    %213 = vmatpush.msra.mxu0 %v64
    %214 = vmatpush.msra.mxu0 %v62
    %215 = vmatpush.msra.mxu0 %v60
    %216 = vmatpush.msra.mxu0 %v58
    %217 = vmatpush.msra.mxu0 %v56
    %218 = vmatpush.msra.mxu0 %v54
    %219 = vmatpush.msra.mxu0 %v52
    %220 = vmatpush.msra.mxu0 %v50
    %221 = vmatpush.msra.mxu0 %v48
    %222 = vmatpush.msra.mxu0 %v46
    %223 = vmatmul.f32.gmra.mxu0 %v159
    %v224 = vpop.f32.mrf.mxu0
    %v225 = vadd.f32 %v164, %v224
    %226 = vdwg.mxu0
    %227 = vmatpush.msra.mxu0 %v108
    %228 = vmatpush.msra.mxu0 %v106
    %229 = vmatpush.msra.mxu0 %v104
    %230 = vmatpush.msra.mxu0 %v102
    %231 = vmatpush.msra.mxu0 %v100
    %232 = vmatpush.msra.mxu0 %v98
    %233 = vmatpush.msra.mxu0 %v96
    %234 = vmatpush.msra.mxu0 %v94
    %235 = vmatpush.msra.mxu0 %v92
    %236 = vmatpush.msra.mxu0 %v90
    %237 = vmatpush.msra.mxu0 %v88
    %238 = vmatpush.msra.mxu0 %v86
    %239 = vmatpush.msra.mxu0 %v84
    %240 = vmatpush.msra.mxu0 %v82
    %241 = vmatpush.msra.mxu0 %v80
    %242 = vmatpush.msra.mxu0 %v78
    %243 = vmatmul.f32.gmra.mxu0 %v160
    %v244 = vpop.f32.mrf.mxu0
    %v245 = vadd.f32 %v225, %v244
    %246 = vdwg.mxu0
    %v247 = vmax.f32 %v205, 0.0
    %v248 = vmax.f32 %v245, 0.0
    %249 = vst [vmem:[%s5] sm:$0xff] %v247
    %250 = vst [vmem:[%s5 + $0x8] sm:$0xff] %v248
    // Predicated region
    $region26: #{box_embedding_forward.1} parent=1 // pred_check
      _
    $region27: #{box_embedding_forward.1} parent=1 // pred_check_branch
      %252 = sbr.rel (0) target = $region29
    $region28: #{box_embedding_forward.1} parent=1 // pred_region
      _
    $region29: #{box_embedding_forward.1} parent=1 // pred_fallthru
      _
    // Predicated region
    $region30: #{box_embedding_forward.1} parent=1 // pred_check
      _
    $region31: #{box_embedding_forward.1} parent=1 // pred_check_branch
      %254 = sbr.rel (0) target = $region33
    $region32: #{box_embedding_forward.1} parent=1 // pred_region
      _
    $region33: #{box_embedding_forward.1} parent=1 // pred_fallthru
      _
    %255 = vsyncpa [#allocation3], 1

</llo_original>
